<compile_context>
chip_gen: v7x
topology: tpu7x:2x2x1
jax: 0.10.0
libtpu: 0.0.40
codegen_flags: <defaults>
</compile_context>

<pallas_src>
import jax
import jax.numpy as jnp
from jax.experimental import pallas as pl
from jax.experimental.pallas import tpu as pltpu

STATE_DIM = 3
HIDDEN = [16, 64, 64, 16, 1]
LANE = 128
SLAB_LANES = 128               # lane width of the packed weight slab (>= max fan-in)


def _round_up(v, m):
    return -(-v // m) * m


def _row_offsets(hidden):
    """Per-layer sublane offsets inside the packed parameter slabs.

    Offsets are 16-aligned so static slices never cross a bf16 (16,128) tile
    boundary.  The final layer's weight is stored transposed (fan_in rows) so
    the VPU epilogue can read it as a (fan_in, 1) column.
    """
    offs, off = [], 0
    for i, h in enumerate(hidden):
        offs.append(off)
        rows = h if i < len(hidden) - 1 else max(h, hidden[i - 1])
        off += _round_up(rows, 16)
    return offs, off


_OFFS, _SLAB_ROWS = _row_offsets(HIDDEN)


def _mlp_kernel(x_ref, w_ref, b_ref, o_ref):
    """Fused forward pass for one lane-tile of batch columns.

    x_ref : (state_dim, tile_n) f32           -- batch in lanes
    w_ref : (_SLAB_ROWS, SLAB_LANES) bf16     -- packed weights (last layer transposed)
    b_ref : (_SLAB_ROWS, 1) f32               -- packed biases
    o_ref : (1, tile_n) f32
    """
    f32 = jnp.float32
    x = x_ref[...]                                           # (3, tile)

    # ---- Layer 1: Linear(3 -> 16) + ReLU on the VPU (K=3 would waste an MXU push).
    o0, d0 = _OFFS[0], HIDDEN[0]
    w1 = w_ref[o0:o0 + d0, 0:STATE_DIM].astype(f32)          # (16, 3)
    h = b_ref[o0:o0 + d0, :]                                 # (16, 1), lane-broadcast
    for k in range(STATE_DIM):                               # static unroll over state_dim
        h = h + w1[:, k:k + 1] * x[k:k + 1, :]
    h = jnp.maximum(h, 0.0)                                  # (16, tile) f32

    # ---- Middle layers on the MXU: bf16 operands, f32 accumulation, f32 bias+ReLU.
    for li in range(1, len(HIDDEN) - 1):
        off, dout, din = _OFFS[li], HIDDEN[li], HIDDEN[li - 1]
        w = w_ref[off:off + dout, 0:din]                     # bf16 (dout, din)
        h = jnp.dot(w, h.astype(jnp.bfloat16),
                    preferred_element_type=f32)              # f32 (dout, tile)
        h = jnp.maximum(h + b_ref[off:off + dout, :], 0.0)

    # ---- Final layer: Linear(16 -> 1), no activation.  M=1 uses <1% of the MXU,
    # so do a VPU MAC + sublane reduction instead (weight stored transposed).
    off, din = _OFFS[-1], HIDDEN[-2]
    w_last = w_ref[off:off + din, 0:1].astype(f32)           # (16, 1)
    y = jnp.sum(w_last * h, axis=0, keepdims=True) + b_ref[off:off + 1, :]
    o_ref[...] = y.astype(o_ref.dtype)                       # (1, tile)


def pack_params(params):
    """Pack the 5 (W, b) pairs into one bf16 weight slab + one f32 bias slab.

    One DMA per slab (both resident in VMEM for every grid step) instead of 10
    tiny (8,128)-padded parameter DMAs in the kernel prologue.
    """
    assert len(params) == len(HIDDEN)
    dims = [STATE_DIM] + list(HIDDEN)
    w_slab = jnp.zeros((_SLAB_ROWS, SLAB_LANES), jnp.float32)
    b_slab = jnp.zeros((_SLAB_ROWS, 1), jnp.float32)
    for i, (w, b) in enumerate(params):
        assert w.shape == (dims[i + 1], dims[i]), (w.shape, i)
        off = _OFFS[i]
        wb = w.astype(jnp.float32)
        if i == len(params) - 1:
            wb = wb.T                                        # (fan_in, 1) for the VPU epilogue
        r, c = wb.shape
        w_slab = w_slab.at[off:off + r, 0:c].set(wb)
        b_slab = b_slab.at[off:off + b.shape[0], 0].set(b.astype(jnp.float32))
    return w_slab.astype(jnp.bfloat16), b_slab


def _pick_tile(n, requested):
    """Lane tile: multiple of 128, <= padded batch, >= 2 grid steps when possible
    (keeps both v7x TensorCores busy via the 'parallel' grid axis)."""
    n128 = _round_up(n, LANE)
    tile = min(requested, n128)
    if n128 >= 2 * LANE:
        tile = min(tile, _round_up(pl.cdiv(n128, 2), LANE))
    return int(max(LANE, (tile // LANE) * LANE))


def nonpara_model_forward(x, params, *, tile_n=4096, packed=None):
    """x: (N, state_dim) float32.  params: list of (W, b), W (out, in), b (out,).

    Returns (N, 1) float32, same semantics as NonparaModel.forward (bf16 MXU
    operands, f32 accumulation).  Pass `packed=pack_params(params)` to reuse
    pre-packed slabs across many calls.
    """
    n, d = x.shape
    assert d == STATE_DIM

    tile = _pick_tile(n, tile_n)
    num_tiles = int(pl.cdiv(n, tile))
    n_pad = num_tiles * tile

    # Batch-in-lanes layout; jnp.pad (not zeros().at[].set) so XLA fuses the
    # transpose + ragged-tail pad into a single pass over x.
    x_t = x.T.astype(jnp.float32)
    if n_pad != n:
        x_t = jnp.pad(x_t, ((0, 0), (0, n_pad - n)))

    w_slab, b_slab = pack_params(params) if packed is None else packed

    out_dim = HIDDEN[-1]
    flops = 2 * sum(int(w.shape[0]) * int(w.shape[1]) for w, _ in params) * n_pad
    bytes_accessed = ((d + out_dim) * 4 * n_pad
                      + int(w_slab.size) * 2 + int(b_slab.size) * 4)
    cost = pl.CostEstimate(flops=flops, transcendentals=0,
                           bytes_accessed=bytes_accessed)

    out = pl.pallas_call(
        _mlp_kernel,
        out_shape=jax.ShapeDtypeStruct((out_dim, n_pad), jnp.float32),
        grid_spec=pltpu.PrefetchScalarGridSpec(
            num_scalar_prefetch=0,
            grid=(num_tiles,),
            in_specs=[
                pl.BlockSpec((d, tile), lambda i: (0, i)),
                pl.BlockSpec(w_slab.shape, lambda i: (0, 0)),   # resident, 1 DMA
                pl.BlockSpec(b_slab.shape, lambda i: (0, 0)),   # resident, 1 DMA
            ],
            out_specs=pl.BlockSpec((out_dim, tile), lambda i: (0, i)),
        ),
        compiler_params=pltpu.CompilerParams(
            dimension_semantics=("parallel",),
        ),
        cost_estimate=cost,
    )(x_t, w_slab, b_slab)

    # Back to the PyTorch convention: (N, 1); padded columns discarded.
    return out[:, :n].T


def init_params(key, state_dim=STATE_DIM, hidden=None):
    """Xavier-normal weights (PyTorch (out, in) layout), zero biases (matches _initial_param)."""
    if hidden is None:
        hidden = HIDDEN
    dims = [state_dim] + list(hidden)
    params = []
    for i in range(len(dims) - 1):
        fan_in, fan_out = dims[i], dims[i + 1]
        key, sub = jax.random.split(key)
        std = (2.0 / (fan_in + fan_out)) ** 0.5
        w = std * jax.random.normal(sub, (fan_out, fan_in), dtype=jnp.float32)
        b = jnp.zeros((fan_out,), dtype=jnp.float32)
        params.append((w, b))
    return params


def reference_forward(x, params, *, quantize_weights=True):
    """Pure-JAX reference (PyTorch convention: y = x @ W.T + b).

    With quantize_weights=True the weights are rounded to bf16 to mirror the
    kernel's bf16 MXU operands (accumulation / everything else stays f32)."""
    h = x.astype(jnp.float32)
    n_layers = len(params)
    for i, (w, b) in enumerate(params):
        wq = w.astype(jnp.float32)
        if quantize_weights:
            wq = wq.astype(jnp.bfloat16).astype(jnp.float32)
        h = h @ wq.T + b
        if i < n_layers - 1:
            h = jnp.maximum(h, 0.0)
    return h


# TODO(synk): only the default config (act='ReLU', hidden=[16,64,64,16,1]) is
# specialized here; Tanh/Sine activations would just swap the jnp.maximum.

if __name__ == "__main__":
    key = jax.random.PRNGKey(0)
    key, kx = jax.random.split(key)

    batch = 200  # small, NOT a multiple of 128: exercises ragged padding + a 2-step grid
    x = jax.random.normal(kx, (batch, STATE_DIM), dtype=jnp.float32)
    params = init_params(key)

    fwd = jax.jit(lambda xx, pp: nonpara_model_forward(xx, pp))
    out = jax.block_until_ready(fwd(x, params))

    ref = reference_forward(x, params)            # bf16-quantized-weight reference
    assert out.shape == (batch, 1), out.shape
    err = float(jnp.max(jnp.abs(out - ref)))
    assert jnp.allclose(out, ref, atol=1e-2, rtol=1e-2), f"mismatch vs reference, max err {err}"

    print("KERNEL_OK")
</pallas_src>

<mosaic_0001>
module attributes {stable_mosaic.version = 11 : i64} {
  func.func @_mlp_kernel(%arg0: i32, %arg1: memref<3x128xf32, #tpu.memory_space<vmem>>, %arg2: memref<176x128xbf16, #tpu.memory_space<vmem>>, %arg3: memref<176x1xf32, #tpu.memory_space<vmem>>, %arg4: memref<1x128xf32, #tpu.memory_space<vmem>>) attributes {dimension_semantics = [#tpu.dimension_semantics<parallel>], iteration_bounds = array<i64: 2>, scalar_prefetch = 0 : i64, scratch_operands = 0 : i64, tpu.core_type = #tpu.core_type<tc>, window_params = [{transform_indices = @transform_0, window_bounds = array<i64: 3, 128>}, {pipeline_mode = #tpu.pipeline_mode<synchronous>, transform_indices = @transform_1, window_bounds = array<i64: 176, 128>}, {pipeline_mode = #tpu.pipeline_mode<synchronous>, transform_indices = @transform_2, window_bounds = array<i64: 176, 1>}, {transform_indices = @transform_3, window_bounds = array<i64: 1, 128>}]} {
    %c0 = arith.constant 0 : index
    %c0_0 = arith.constant 0 : index
    %0 = vector.load %arg1[%c0, %c0_0] : memref<3x128xf32, #tpu.memory_space<vmem>>, vector<3x128xf32>
    %c0_1 = arith.constant 0 : index
    %c0_2 = arith.constant 0 : index
    %1 = vector.load %arg2[%c0_1, %c0_2] : memref<176x128xbf16, #tpu.memory_space<vmem>>, vector<16x3xbf16>
    %2 = arith.extf %1 : vector<16x3xbf16> to vector<16x3xf32>
    %c0_3 = arith.constant 0 : index
    %c0_4 = arith.constant 0 : index
    %3 = vector.load %arg3[%c0_3, %c0_4] : memref<176x1xf32, #tpu.memory_space<vmem>>, vector<16x1xf32>
    %4 = vector.extract_strided_slice %2 {offsets = [0, 0], sizes = [16, 1], strides = [1, 1]} : vector<16x3xf32> to vector<16x1xf32>
    %5 = vector.extract_strided_slice %0 {offsets = [0, 0], sizes = [1, 128], strides = [1, 1]} : vector<3x128xf32> to vector<1x128xf32>
    %6 = vector.broadcast %4 : vector<16x1xf32> to vector<16x128xf32>
    %7 = vector.broadcast %5 : vector<1x128xf32> to vector<16x128xf32>
    %8 = arith.mulf %6, %7 : vector<16x128xf32>
    %9 = vector.broadcast %3 : vector<16x1xf32> to vector<16x128xf32>
    %10 = arith.addf %9, %8 : vector<16x128xf32>
    %11 = vector.extract_strided_slice %2 {offsets = [0, 1], sizes = [16, 1], strides = [1, 1]} : vector<16x3xf32> to vector<16x1xf32>
    %12 = vector.extract_strided_slice %0 {offsets = [1, 0], sizes = [1, 128], strides = [1, 1]} : vector<3x128xf32> to vector<1x128xf32>
    %13 = vector.broadcast %11 : vector<16x1xf32> to vector<16x128xf32>
    %14 = vector.broadcast %12 : vector<1x128xf32> to vector<16x128xf32>
    %15 = arith.mulf %13, %14 : vector<16x128xf32>
    %16 = arith.addf %10, %15 : vector<16x128xf32>
    %17 = vector.extract_strided_slice %2 {offsets = [0, 2], sizes = [16, 1], strides = [1, 1]} : vector<16x3xf32> to vector<16x1xf32>
    %18 = vector.extract_strided_slice %0 {offsets = [2, 0], sizes = [1, 128], strides = [1, 1]} : vector<3x128xf32> to vector<1x128xf32>
    %19 = vector.broadcast %17 : vector<16x1xf32> to vector<16x128xf32>
    %20 = vector.broadcast %18 : vector<1x128xf32> to vector<16x128xf32>
    %21 = arith.mulf %19, %20 : vector<16x128xf32>
    %22 = arith.addf %16, %21 : vector<16x128xf32>
    %cst = arith.constant 0.000000e+00 : f32
    %23 = vector.broadcast %cst : f32 to vector<16x128xf32>
    %24 = arith.maximumf %22, %23 : vector<16x128xf32>
    %c16 = arith.constant 16 : index
    %c0_5 = arith.constant 0 : index
    %25 = vector.load %arg2[%c16, %c0_5] : memref<176x128xbf16, #tpu.memory_space<vmem>>, vector<64x16xbf16>
    %26 = arith.truncf %24 : vector<16x128xf32> to vector<16x128xbf16>
    %cst_6 = arith.constant dense<0.000000e+00> : vector<64x128xf32>
    %27 = tpu.matmul %25, %26, %cst_6 {dimension_numbers = #tpu.dot_dimension_numbers<[1], [0], [0], [1], [0, 0, 1, 1], [], []>} : vector<64x16xbf16>, vector<16x128xbf16>, vector<64x128xf32> -> vector<64x128xf32>
    %c16_7 = arith.constant 16 : index
    %c0_8 = arith.constant 0 : index
    %28 = vector.load %arg3[%c16_7, %c0_8] : memref<176x1xf32, #tpu.memory_space<vmem>>, vector<64x1xf32>
    %29 = vector.broadcast %28 : vector<64x1xf32> to vector<64x128xf32>
    %30 = arith.addf %27, %29 : vector<64x128xf32>
    %cst_9 = arith.constant 0.000000e+00 : f32
    %31 = vector.broadcast %cst_9 : f32 to vector<64x128xf32>
    %32 = arith.maximumf %30, %31 : vector<64x128xf32>
    %c80 = arith.constant 80 : index
    %c0_10 = arith.constant 0 : index
    %33 = vector.load %arg2[%c80, %c0_10] : memref<176x128xbf16, #tpu.memory_space<vmem>>, vector<64x64xbf16>
    %34 = arith.truncf %32 : vector<64x128xf32> to vector<64x128xbf16>
    %cst_11 = arith.constant dense<0.000000e+00> : vector<64x128xf32>
    %35 = tpu.matmul %33, %34, %cst_11 {dimension_numbers = #tpu.dot_dimension_numbers<[1], [0], [0], [1], [0, 0, 1, 1], [], []>} : vector<64x64xbf16>, vector<64x128xbf16>, vector<64x128xf32> -> vector<64x128xf32>
    %c80_12 = arith.constant 80 : index
    %c0_13 = arith.constant 0 : index
    %36 = vector.load %arg3[%c80_12, %c0_13] : memref<176x1xf32, #tpu.memory_space<vmem>>, vector<64x1xf32>
    %37 = vector.broadcast %36 : vector<64x1xf32> to vector<64x128xf32>
    %38 = arith.addf %35, %37 : vector<64x128xf32>
    %cst_14 = arith.constant 0.000000e+00 : f32
    %39 = vector.broadcast %cst_14 : f32 to vector<64x128xf32>
    %40 = arith.maximumf %38, %39 : vector<64x128xf32>
    %c144 = arith.constant 144 : index
    %c0_15 = arith.constant 0 : index
    %41 = vector.load %arg2[%c144, %c0_15] : memref<176x128xbf16, #tpu.memory_space<vmem>>, vector<16x64xbf16>
    %42 = arith.truncf %40 : vector<64x128xf32> to vector<64x128xbf16>
    %cst_16 = arith.constant dense<0.000000e+00> : vector<16x128xf32>
    %43 = tpu.matmul %41, %42, %cst_16 {dimension_numbers = #tpu.dot_dimension_numbers<[1], [0], [0], [1], [0, 0, 1, 1], [], []>} : vector<16x64xbf16>, vector<64x128xbf16>, vector<16x128xf32> -> vector<16x128xf32>
    %c144_17 = arith.constant 144 : index
    %c0_18 = arith.constant 0 : index
    %44 = vector.load %arg3[%c144_17, %c0_18] : memref<176x1xf32, #tpu.memory_space<vmem>>, vector<16x1xf32>
    %45 = vector.broadcast %44 : vector<16x1xf32> to vector<16x128xf32>
    %46 = arith.addf %43, %45 : vector<16x128xf32>
    %cst_19 = arith.constant 0.000000e+00 : f32
    %47 = vector.broadcast %cst_19 : f32 to vector<16x128xf32>
    %48 = arith.maximumf %46, %47 : vector<16x128xf32>
    %c160 = arith.constant 160 : index
    %c0_20 = arith.constant 0 : index
    %49 = vector.load %arg2[%c160, %c0_20] : memref<176x128xbf16, #tpu.memory_space<vmem>>, vector<16x1xbf16>
    %50 = arith.extf %49 : vector<16x1xbf16> to vector<16x1xf32>
    %51 = vector.broadcast %50 : vector<16x1xf32> to vector<16x128xf32>
    %52 = arith.mulf %51, %48 : vector<16x128xf32>
    %cst_21 = arith.constant dense<0.000000e+00> : vector<128xf32>
    %53 = vector.multi_reduction <add>, %52, %cst_21 [0] : vector<16x128xf32> to vector<128xf32>
    %54 = vector.shape_cast %53 : vector<128xf32> to vector<1x128xf32>
    %c160_22 = arith.constant 160 : index
    %c0_23 = arith.constant 0 : index
    %55 = vector.load %arg3[%c160_22, %c0_23] : memref<176x1xf32, #tpu.memory_space<vmem>>, vector<1x1xf32>
    %56 = vector.broadcast %55 : vector<1x1xf32> to vector<1x128xf32>
    %57 = arith.addf %54, %56 : vector<1x128xf32>
    %c0_24 = arith.constant 0 : index
    %c0_25 = arith.constant 0 : index
    %58 = vector.load %arg4[%c0_24, %c0_25] : memref<1x128xf32, #tpu.memory_space<vmem>>, vector<1x128xf32>
    tpu.vector_store %arg4[%c0_24, %c0_25], %57 {strides = array<i32>} : memref<1x128xf32, #tpu.memory_space<vmem>>, vector<1x128xf32>,
    return
  }
  func.func @transform_0(%arg0: i32) -> (i32, i32) {
    %c0_i32 = arith.constant 0 : i32
    %c0_i32_0 = arith.constant 0 : i32
    return %c0_i32, %arg0 : i32, i32
  }
  func.func @transform_1(%arg0: i32) -> (i32, i32) {
    %c0_i32 = arith.constant 0 : i32
    %c0_i32_0 = arith.constant 0 : i32
    %c0_i32_1 = arith.constant 0 : i32
    return %c0_i32, %c0_i32_0 : i32, i32
  }
  func.func @transform_2(%arg0: i32) -> (i32, i32) {
    %c0_i32 = arith.constant 0 : i32
    %c0_i32_0 = arith.constant 0 : i32
    %c0_i32_1 = arith.constant 0 : i32
    return %c0_i32, %c0_i32_0 : i32, i32
  }
  func.func @transform_3(%arg0: i32) -> (i32, i32) {
    %c0_i32 = arith.constant 0 : i32
    %c0_i32_0 = arith.constant 0 : i32
    return %c0_i32, %arg0 : i32, i32
  }
}

</mosaic_0001>

<llo_original>
// kernel: _lambda_.1
$region0: #{_lambda_.1}
  #allocation0 [shape = 'u32[]', space=smem, size = 0x4, offset = 0x4, fixed_abs, tag = 'smem constant byte address 0x4 - core index']
  #allocation1 [shape = 'u32[144,128]{1,0:T(1,128)}', space=vmem, size = 0x12000, scoped, tag = 'internal scratch']
  %s0 = inlined_call_operand.vmem [shape: f32[3,256], index: 0, kind: input, shape index: {}]
  %s1 = inlined_call_operand.vmem [shape: bf16[176,128], index: 1, kind: input, shape index: {}]
  %s2 = inlined_call_operand.vmem [shape: f32[176,1], index: 2, kind: input, shape index: {}]
  %s3 = inlined_call_operand.vmem [shape: f32[1,256], index: 3, kind: output, shape index: {}]
  %s4 = sld [smem:[#allocation0]]
  $region45: #{_lambda_.1} parent=0
    _
  %s6 = ssub.s32 1, %s4
  %s7 = scalar_select 0, %s6, %s4
  loop: start=0, step=1, limit=4
  $region2: #{_lambda_.1} parent=0 // loop_pre_header
    _
  $region3: #{_lambda_.1} parent=0 // loop_header
    %s9 = sphi 0, %s13
    %p10 = scmp.ge.s32.totalorder %s9, 4
    %s19 = sphi 0, %s21
    %s22 = sphi 0, %s19
    %s23 = sphi 0, %s22
    %s39 = sphi 0, %s23
    %s43 = sphi 0, %s43
    %s45 = sphi 0, %s43
    %s46 = sphi 0, %s45
    %s60 = sphi 0, %s46
    %s64 = sphi 0, %s64
    %s66 = sphi 0, %s64
    %s67 = sphi 0, %s66
    %s81 = sphi 0, %s67
    %s87 = sphi 0, %s89
    %s90 = sphi 0, %s87
    %s91 = sphi 0, %s90
    %s107 = sphi 0, %s91
  $region4: #{_lambda_.1} parent=0 // loop_header_branch
    %12 = sbr.rel (%p10) target = $region8
  $region5: #{_lambda_.1} parent=0 // loop_body
    %s14 = ssub.s32 %s9, 1
    %s15 = ssub.s32 %s9, 2
    %s16 = sadd.s32 %s9, 1
    %s17 = ssub.s32 %s9, %s16
    %p18 = scmp.eq.s32.totalorder %s17, 0
    %s20 = sadd.s32 %s19, 1
    %s21 = scalar_select %p18, %s19, %s20
    %p24 = pneg %p18
    %p25 = scmp.eq.s32.totalorder %s9, 1
    %p26 = por %p24, %p25
    %p27 = scmp.ne.s32.totalorder %s19, %s22
    %p28 = scmp.eq.s32.totalorder %s9, 0
    %p29 = por %p27, %p28
    %p30 = scmp.ne.s32.totalorder %s19, %s22
    %p31 = scmp.eq.s32.totalorder %s14, 1
    %p32 = por %p30, %p31
    %p33 = scmp.ne.s32.totalorder %s22, %s23
    %p34 = scmp.eq.s32.totalorder %s14, 0
    %p35 = por %p33, %p34
    %p36 = scmp.ne.s32.totalorder %s22, %s23
    %p37 = scmp.eq.s32.totalorder %s15, 1
    %p38 = por %p36, %p37
    %p40 = scmp.ne.s32.totalorder %s23, %s39
    %p41 = scmp.eq.s32.totalorder %s15, 0
    %p42 = por %p40, %p41
    %s44 = sadd.s32 %s43, 1
    %p47 = scmp.eq.s32.totalorder %s9, 1
    %p48 = scmp.ne.s32.totalorder %s43, %s45
    %p49 = scmp.eq.s32.totalorder %s9, 0
    %p50 = por %p48, %p49
    %p51 = scmp.ne.s32.totalorder %s43, %s45
    %p52 = scmp.eq.s32.totalorder %s14, 1
    %p53 = por %p51, %p52
    %p54 = scmp.ne.s32.totalorder %s45, %s46
    %p55 = scmp.eq.s32.totalorder %s14, 0
    %p56 = por %p54, %p55
    %p57 = scmp.ne.s32.totalorder %s45, %s46
    %p58 = scmp.eq.s32.totalorder %s15, 1
    %p59 = por %p57, %p58
    %p61 = scmp.ne.s32.totalorder %s46, %s60
    %p62 = scmp.eq.s32.totalorder %s15, 0
    %p63 = por %p61, %p62
    %s65 = sadd.s32 %s64, 1
    %p68 = scmp.eq.s32.totalorder %s9, 1
    %p69 = scmp.ne.s32.totalorder %s64, %s66
    %p70 = scmp.eq.s32.totalorder %s9, 0
    %p71 = por %p69, %p70
    %p72 = scmp.ne.s32.totalorder %s64, %s66
    %p73 = scmp.eq.s32.totalorder %s14, 1
    %p74 = por %p72, %p73
    %p75 = scmp.ne.s32.totalorder %s66, %s67
    %p76 = scmp.eq.s32.totalorder %s14, 0
    %p77 = por %p75, %p76
    %p78 = scmp.ne.s32.totalorder %s66, %s67
    %p79 = scmp.eq.s32.totalorder %s15, 1
    %p80 = por %p78, %p79
    %p82 = scmp.ne.s32.totalorder %s67, %s81
    %p83 = scmp.eq.s32.totalorder %s15, 0
    %p84 = por %p82, %p83
    %s85 = ssub.s32 %s9, %s16
    %p86 = scmp.eq.s32.totalorder %s85, 0
    %s88 = sadd.s32 %s87, 1
    %s89 = scalar_select %p86, %s87, %s88
    %p92 = pneg %p86
    %p93 = scmp.eq.s32.totalorder %s9, 1
    %p94 = por %p92, %p93
    %p95 = scmp.ne.s32.totalorder %s87, %s90
    %p96 = scmp.eq.s32.totalorder %s9, 0
    %p97 = por %p95, %p96
    %p98 = scmp.ne.s32.totalorder %s87, %s90
    %p99 = scmp.eq.s32.totalorder %s14, 1
    %p100 = por %p98, %p99
    %p101 = scmp.ne.s32.totalorder %s90, %s91
    %p102 = scmp.eq.s32.totalorder %s14, 0
    %p103 = por %p101, %p102
    %p104 = scmp.ne.s32.totalorder %s90, %s91
    %p105 = scmp.eq.s32.totalorder %s15, 1
    %p106 = por %p104, %p105
    %p108 = scmp.ne.s32.totalorder %s91, %s107
    %p109 = scmp.eq.s32.totalorder %s15, 0
    %p110 = por %p108, %p109
    %p111 = scmp.le.s32.totalorder 1, %s9
    %p112 = scmp.lt.s32.totalorder %s9, 3
    %p113 = pnand %p111, %p112
    %p114 = pneg %p113
    // Predicated region
    $region9: #{_lambda_.1} parent=5 // pred_check
      _
    $region10: #{_lambda_.1} parent=5 // pred_check_branch
      %116 = sbr.rel (%p113) target = $region12
    $region11: #{_lambda_.1} parent=5 // pred_region
      %s117 = ssub.s32 %s9, 1
      // Predicated region
      $region13: #{_lambda_.1} parent=11 // pred_check
        %p118 = pneg %p56
      $region14: #{_lambda_.1} parent=11 // pred_check_branch
        %120 = sbr.rel (%p118) target = $region16
      $region15: #{_lambda_.1} parent=11 // pred_region
        _
      $region16: #{_lambda_.1} parent=11 // pred_fallthru
        _
      // Predicated region
      $region17: #{_lambda_.1} parent=11 // pred_check
        %p121 = pneg %p77
      $region18: #{_lambda_.1} parent=11 // pred_check_branch
        %123 = sbr.rel (%p121) target = $region20
      $region19: #{_lambda_.1} parent=11 // pred_region
        _
      $region20: #{_lambda_.1} parent=11 // pred_fallthru
        _
    $region12: #{_lambda_.1} parent=5 // pred_fallthru
      _
    %p124 = scmp.lt.s32.totalorder %s9, 2
    // Predicated region
    $region21: #{_lambda_.1} parent=5 // pred_check
      %p125 = pneg %p124
    $region22: #{_lambda_.1} parent=5 // pred_check_branch
      %127 = sbr.rel (%p125) target = $region24
    $region23: #{_lambda_.1} parent=5 // pred_region
      // Predicated region
      $region25: #{_lambda_.1} parent=23 // pred_check
        %p128 = pneg %p29
      $region26: #{_lambda_.1} parent=23 // pred_check_branch
        %130 = sbr.rel (%p128) target = $region28
      $region27: #{_lambda_.1} parent=23 // pred_region
        %p131 = scmp.lt.s32.totalorder %s9, 1
        %s132 = scalar_select %p131, %s9, 1
        %s133 = smul.addr %s132, 4
        %s134 = scalar_lea.vmem %s0, %s133
      $region28: #{_lambda_.1} parent=23 // pred_fallthru
        _
    $region24: #{_lambda_.1} parent=5 // pred_fallthru
      _
    %p135 = scmp.le.s32.totalorder 1, %s9
    %p136 = scmp.lt.s32.totalorder %s9, 3
    %p137 = pnand %p135, %p136
    %p138 = pneg %p137
    // Predicated region
    $region29: #{_lambda_.1} parent=5 // pred_check
      _
    $region30: #{_lambda_.1} parent=5 // pred_check_branch
      %140 = sbr.rel (%p137) target = $region32
    $region31: #{_lambda_.1} parent=5 // pred_region
      %s141 = ssub.s32 %s9, 1
      %p142 = scmp.lt.s32.totalorder %s14, 1
      %s143 = scalar_select %p142, %s14, 1
      %s144 = smul.addr %s143, 4
      %s145 = scalar_lea.vmem %s0, %s144
      %p146 = pneg %p35
      %p147 = pneg %p32
      %p148 = pneg %p56
      %p149 = pneg %p53
      %p150 = pneg %p77
      %p151 = pneg %p74
      %p152 = pneg %p103
      %p153 = pneg %p100
      %p154 = scmp.lt.s32.totalorder %s14, 1
      %s155 = scalar_select %p154, %s14, 1
      %s156 = scalar_lea.vmem %s3, %s155
      %p157 = scmp.lt.s32.totalorder %s14, 1
      %s158 = scalar_select %p157, %s14, 1
      %s159 = smul.addr %s158, 4
      %s160 = scalar_lea.vmem %s0, %s159
      %p161 = scmp.lt.s32.totalorder %s14, 1
      %s162 = scalar_select %p161, %s14, 1
      %s163 = scalar_lea.vmem %s3, %s162
      %v165 = vld [vmem:[%s160] sm:$0x7]
      %v166 = vld [vmem:[%s1] sm:$0xf]
      %v167 = vld [vmem:[%s1 + $0x4] sm:$0xf]
      %v168 = vunpack.c.l.bf16 %v166
      %v169 = vunpack.c.l.bf16 %v167
      %v170 = vld [vmem:[%s2] sm:$0xff]
      %v171 = vld [vmem:[%s2 + $0x8] sm:$0xff]
      %173 = vset.pattern.permute.xlu0 0
      %174 = vperm.xlu0 %173, %v168
      %v175 = vpop.permute.xlu0 %174
      %178 = vset.pattern.permute.xlu0 0
      %179 = vperm.xlu0 %178, %v169
      %v180 = vpop.permute.xlu0 %179
      %v182 = vlaneseq
      %v183 = vshrl.u32 %v182, 7
      %v184 = vsub.s32 0, %v183
      %v185 = vrot.slane %v165, %v184
      %v186 = vmul.f32 %v175, %v185
      %v187 = vmul.f32 %v180, %v185
      %189 = vset.pattern.permute.xlu0 0
      %190 = vperm.xlu0 %189, %v170
      %v191 = vpop.permute.xlu0 %190
      %194 = vset.pattern.permute.xlu0 0
      %195 = vperm.xlu0 %194, %v171
      %v196 = vpop.permute.xlu0 %195
      %v198 = vadd.f32 %v191, %v186
      %v199 = vadd.f32 %v196, %v187
      %200 = vset.pattern.permute.xlu0 1
      %201 = vperm.xlu0 %200, %v168
      %v202 = vpop.permute.xlu0 %201
      %204 = vset.pattern.permute.xlu0 1
      %205 = vperm.xlu0 %204, %v169
      %v206 = vpop.permute.xlu0 %205
      %v208 = vlaneseq
      %v209 = vshrl.u32 %v208, 7
      %v210 = vsub.s32 1, %v209
      %v211 = vrot.slane %v165, %v210
      %v212 = vmul.f32 %v202, %v211
      %v213 = vmul.f32 %v206, %v211
      %v214 = vadd.f32 %v198, %v212
      %v215 = vadd.f32 %v199, %v213
      %216 = vset.pattern.permute.xlu0 2
      %217 = vperm.xlu0 %216, %v168
      %v218 = vpop.permute.xlu0 %217
      %220 = vset.pattern.permute.xlu0 2
      %221 = vperm.xlu0 %220, %v169
      %v222 = vpop.permute.xlu0 %221
      %v224 = vlaneseq
      %v225 = vshrl.u32 %v224, 7
      %v226 = vsub.s32 2, %v225
      %v227 = vrot.slane %v165, %v226
      %v228 = vmul.f32 %v218, %v227
      %v229 = vmul.f32 %v222, %v227
      %v230 = vadd.f32 %v214, %v228
      %v231 = vadd.f32 %v215, %v229
      %v232 = vmax.f32 %v230, 0.0
      %v233 = vmax.f32 %v231, 0.0
      %v234 = vld [vmem:[%s1 + $0x8] sm:$0xf]
      %v235 = vld [vmem:[%s1 + $0xc] sm:$0xf]
      %v236 = vld [vmem:[%s1 + $0x10] sm:$0xf]
      %v237 = vld [vmem:[%s1 + $0x14] sm:$0xf]
      %v238 = vld [vmem:[%s1 + $0x18] sm:$0xf]
      %v239 = vld [vmem:[%s1 + $0x1c] sm:$0xf]
      %v240 = vld [vmem:[%s1 + $0x20] sm:$0xf]
      %v241 = vld [vmem:[%s1 + $0x24] sm:$0xf]
      %v242 = vpack.c.bf16 %v233, %v232
      %v243 = vld [vmem:[%s2 + $0x10] sm:$0xff]
      %v244 = vld [vmem:[%s2 + $0x18] sm:$0xff]
      %v245 = vld [vmem:[%s2 + $0x20] sm:$0xff]
      %v246 = vld [vmem:[%s2 + $0x28] sm:$0xff]
      %v247 = vld [vmem:[%s2 + $0x30] sm:$0xff]
      %v248 = vld [vmem:[%s2 + $0x38] sm:$0xff]
      %v249 = vld [vmem:[%s2 + $0x40] sm:$0xff]
      %v250 = vld [vmem:[%s2 + $0x48] sm:$0xff]
      %252 = vset.pattern.permute.xlu0 0
      %253 = vperm.xlu0 %252, %v243
      %v254 = vpop.permute.xlu0 %253
      %257 = vset.pattern.permute.xlu0 0
      %258 = vperm.xlu0 %257, %v244
      %v259 = vpop.permute.xlu0 %258
      %262 = vset.pattern.permute.xlu0 0
      %263 = vperm.xlu0 %262, %v245
      %v264 = vpop.permute.xlu0 %263
      %267 = vset.pattern.permute.xlu0 0
      %268 = vperm.xlu0 %267, %v246
      %v269 = vpop.permute.xlu0 %268
      %272 = vset.pattern.permute.xlu0 0
      %273 = vperm.xlu0 %272, %v247
      %v274 = vpop.permute.xlu0 %273
      %277 = vset.pattern.permute.xlu0 0
      %278 = vperm.xlu0 %277, %v248
      %v279 = vpop.permute.xlu0 %278
      %282 = vset.pattern.permute.xlu0 0
      %283 = vperm.xlu0 %282, %v249
      %v284 = vpop.permute.xlu0 %283
      %287 = vset.pattern.permute.xlu0 0
      %288 = vperm.xlu0 %287, %v250
      %v289 = vpop.permute.xlu0 %288
      %v299 = vunpack.c.l.b16 %v234
      %v300 = vunpack.c.l.b16 %v235
      %v301 = vunpack.c.l.b16 %v236
      %v302 = vunpack.c.l.b16 %v237
      %v303 = vunpack.c.l.b16 %v238
      %v304 = vunpack.c.l.b16 %v239
      %v305 = vunpack.c.l.b16 %v240
      %v306 = vunpack.c.l.b16 %v241
      %v307 = vpack.c.b16 %v300, %v299
      %v308 = vpack.c.b16 %v302, %v301
      %v309 = vpack.c.b16 %v304, %v303
      %v310 = vpack.c.b16 %v306, %v305
      %vm311 = vcmask 130048
      %v313 = vsel %vm311, %v307, 0
      %v316 = vsel %vm311, %v308, 0
      %v319 = vsel %vm311, %v309, 0
      %v322 = vsel %vm311, %v310, 0
      %324 = vmatprep.subr.bf16.mxu0 0
      %325 = vmatpush1.bf16.msra.mxu0 %v242
      %326 = vmatprep.subr.bf16.mxu0 0
      %327 = vmatpush1.bf16.msra.mxu0 0
      %328 = vmatprep.subr.bf16.mxu0 0
      %329 = vmatpush1.bf16.msra.mxu0 0
      %330 = vmatprep.subr.bf16.mxu0 0
      %331 = vmatpush1.bf16.msra.mxu0 0
      %332 = vmatprep.subr.bf16.mxu0 0
      %333 = vmatpush1.bf16.msra.mxu0 0
      %334 = vmatprep.subr.bf16.mxu0 0
      %335 = vmatpush1.bf16.msra.mxu0 0
      %336 = vmatprep.subr.bf16.mxu0 0
      %337 = vmatpush1.bf16.msra.mxu0 0
      %338 = vmatprep.subr.bf16.mxu0 0
      %339 = vmatpush1.bf16.msra.mxu0 0
      %340 = vmatprep.subr.bf16.mxu0 0
      %341 = vmatpush1.bf16.msra.mxu0 0
      %342 = vmatprep.subr.bf16.mxu0 0
      %343 = vmatpush1.bf16.msra.mxu0 0
      %344 = vmatprep.subr.bf16.mxu0 0
      %345 = vmatpush1.bf16.msra.mxu0 0
      %346 = vmatprep.subr.bf16.mxu0 0
      %347 = vmatpush1.bf16.msra.mxu0 0
      %348 = vmatprep.subr.bf16.mxu0 0
      %349 = vmatpush1.bf16.msra.mxu0 0
      %350 = vmatprep.subr.bf16.mxu0 0
      %351 = vmatpush1.bf16.msra.mxu0 0
      %352 = vmatprep.subr.bf16.mxu0 0
      %353 = vmatpush1.bf16.msra.mxu0 0
      %354 = vmatprep.subr.bf16.mxu0 0
      %355 = vmatpush1.bf16.msra.mxu0 0
      %356 = vmatprep.mubr.bf16.mxu0 0
      %357 = vmatmul.mubr.bf16.gmra.mrb[0].mxu0 %v313
      %v358 = vpop.f32.mrb[0].mxu0
      %v359 = vadd.f32 %v254, %v358
      %v360 = vpop.f32.mrb[0].mxu0
      %v361 = vpop.f32.mrb[0].mxu0
      %v362 = vadd.f32 %v259, %v361
      %v363 = vpop.f32.mrb[0].mxu0
      %364 = vmatprep.mubr.bf16.mxu0 0
      %365 = vmatmul.mubr.bf16.gmra.mrb[0].mxu0 %v316
      %v366 = vpop.f32.mrb[0].mxu0
      %v367 = vadd.f32 %v264, %v366
      %v368 = vpop.f32.mrb[0].mxu0
      %v369 = vpop.f32.mrb[0].mxu0
      %v370 = vadd.f32 %v269, %v369
      %v371 = vpop.f32.mrb[0].mxu0
      %372 = vmatprep.mubr.bf16.mxu0 0
      %373 = vmatmul.mubr.bf16.gmra.mrb[0].mxu0 %v319
      %v374 = vpop.f32.mrb[0].mxu0
      %v375 = vadd.f32 %v274, %v374
      %v376 = vpop.f32.mrb[0].mxu0
      %v377 = vpop.f32.mrb[0].mxu0
      %v378 = vadd.f32 %v279, %v377
      %v379 = vpop.f32.mrb[0].mxu0
      %380 = vmatprep.mubr.bf16.mxu0 0
      %381 = vmatmul.mubr.bf16.gmra.mrb[0].mxu0 %v322
      %v382 = vpop.f32.mrb[0].mxu0
      %v383 = vadd.f32 %v284, %v382
      %v384 = vpop.f32.mrb[0].mxu0
      %v385 = vpop.f32.mrb[0].mxu0
      %v386 = vadd.f32 %v289, %v385
      %v387 = vpop.f32.mrb[0].mxu0
      %388 = vdwg.mxu0
      %v389 = vmax.f32 %v359, 0.0
      %v390 = vmax.f32 %v362, 0.0
      %v391 = vmax.f32 %v367, 0.0
      %v392 = vmax.f32 %v370, 0.0
      %v393 = vmax.f32 %v375, 0.0
      %v394 = vmax.f32 %v378, 0.0
      %v395 = vmax.f32 %v383, 0.0
      %v396 = vmax.f32 %v386, 0.0
      %v397 = vld [vmem:[%s1 + $0x28] sm:$0xf]
      %v398 = vld [vmem:[%s1 + $0x2c] sm:$0xf]
      %v399 = vld [vmem:[%s1 + $0x30] sm:$0xf]
      %v400 = vld [vmem:[%s1 + $0x34] sm:$0xf]
      %v401 = vld [vmem:[%s1 + $0x38] sm:$0xf]
      %v402 = vld [vmem:[%s1 + $0x3c] sm:$0xf]
      %v403 = vld [vmem:[%s1 + $0x40] sm:$0xf]
      %v404 = vld [vmem:[%s1 + $0x44] sm:$0xf]
      %v405 = vpack.c.bf16 %v390, %v389
      %v406 = vpack.c.bf16 %v392, %v391
      %v407 = vpack.c.bf16 %v394, %v393
      %v408 = vpack.c.bf16 %v396, %v395
      %v409 = vld [vmem:[%s2 + $0x50] sm:$0xff]
      %v410 = vld [vmem:[%s2 + $0x58] sm:$0xff]
      %v411 = vld [vmem:[%s2 + $0x60] sm:$0xff]
      %v412 = vld [vmem:[%s2 + $0x68] sm:$0xff]
      %v413 = vld [vmem:[%s2 + $0x70] sm:$0xff]
      %v414 = vld [vmem:[%s2 + $0x78] sm:$0xff]
      %v415 = vld [vmem:[%s2 + $0x80] sm:$0xff]
      %v416 = vld [vmem:[%s2 + $0x88] sm:$0xff]
      %418 = vset.pattern.permute.xlu0 0
      %419 = vperm.xlu0 %418, %v409
      %v420 = vpop.permute.xlu0 %419
      %423 = vset.pattern.permute.xlu0 0
      %424 = vperm.xlu0 %423, %v410
      %v425 = vpop.permute.xlu0 %424
      %428 = vset.pattern.permute.xlu0 0
      %429 = vperm.xlu0 %428, %v411
      %v430 = vpop.permute.xlu0 %429
      %433 = vset.pattern.permute.xlu0 0
      %434 = vperm.xlu0 %433, %v412
      %v435 = vpop.permute.xlu0 %434
      %438 = vset.pattern.permute.xlu0 0
      %439 = vperm.xlu0 %438, %v413
      %v440 = vpop.permute.xlu0 %439
      %443 = vset.pattern.permute.xlu0 0
      %444 = vperm.xlu0 %443, %v414
      %v445 = vpop.permute.xlu0 %444
      %448 = vset.pattern.permute.xlu0 0
      %449 = vperm.xlu0 %448, %v415
      %v450 = vpop.permute.xlu0 %449
      %453 = vset.pattern.permute.xlu0 0
      %454 = vperm.xlu0 %453, %v416
      %v455 = vpop.permute.xlu0 %454
      %v465 = vunpack.c.l.b16 %v397
      %v466 = vunpack.c.l.b16 %v398
      %v467 = vunpack.c.l.b16 %v399
      %v468 = vunpack.c.l.b16 %v400
      %v469 = vunpack.c.l.b16 %v401
      %v470 = vunpack.c.l.b16 %v402
      %v471 = vunpack.c.l.b16 %v403
      %v472 = vunpack.c.l.b16 %v404
      %v473 = vpack.c.b16 %v466, %v465
      %v474 = vpack.c.b16 %v468, %v467
      %v475 = vpack.c.b16 %v470, %v469
      %v476 = vpack.c.b16 %v472, %v471
      %vm477 = vcmask 523264
      %v479 = vsel %vm477, %v473, 0
      %v482 = vsel %vm477, %v474, 0
      %v485 = vsel %vm477, %v475, 0
      %v488 = vsel %vm477, %v476, 0
      %490 = vmatprep.subr.bf16.mxu0 0
      %491 = vmatpush1.bf16.msra.mxu0 %v405
      %492 = vmatprep.subr.bf16.mxu0 0
      %493 = vmatpush1.bf16.msra.mxu0 %v406
      %494 = vmatprep.subr.bf16.mxu0 0
      %495 = vmatpush1.bf16.msra.mxu0 %v407
      %496 = vmatprep.subr.bf16.mxu0 0
      %497 = vmatpush1.bf16.msra.mxu0 %v408
      %498 = vmatprep.subr.bf16.mxu0 0
      %499 = vmatpush1.bf16.msra.mxu0 0
      %500 = vmatprep.subr.bf16.mxu0 0
      %501 = vmatpush1.bf16.msra.mxu0 0
      %502 = vmatprep.subr.bf16.mxu0 0
      %503 = vmatpush1.bf16.msra.mxu0 0
      %504 = vmatprep.subr.bf16.mxu0 0
      %505 = vmatpush1.bf16.msra.mxu0 0
      %506 = vmatprep.subr.bf16.mxu0 0
      %507 = vmatpush1.bf16.msra.mxu0 0
      %508 = vmatprep.subr.bf16.mxu0 0
      %509 = vmatpush1.bf16.msra.mxu0 0
      %510 = vmatprep.subr.bf16.mxu0 0
      %511 = vmatpush1.bf16.msra.mxu0 0
      %512 = vmatprep.subr.bf16.mxu0 0
      %513 = vmatpush1.bf16.msra.mxu0 0
      %514 = vmatprep.subr.bf16.mxu0 0
      %515 = vmatpush1.bf16.msra.mxu0 0
      %516 = vmatprep.subr.bf16.mxu0 0
      %517 = vmatpush1.bf16.msra.mxu0 0
      %518 = vmatprep.subr.bf16.mxu0 0
      %519 = vmatpush1.bf16.msra.mxu0 0
      %520 = vmatprep.subr.bf16.mxu0 0
      %521 = vmatpush1.bf16.msra.mxu0 0
      %522 = vmatprep.mubr.bf16.mxu0 0
      %523 = vmatmul.mubr.bf16.gmra.mrb[0].mxu0 %v479
      %v524 = vpop.f32.mrb[0].mxu0
      %v525 = vadd.f32 %v420, %v524
      %v526 = vpop.f32.mrb[0].mxu0
      %v527 = vpop.f32.mrb[0].mxu0
      %v528 = vadd.f32 %v425, %v527
      %v529 = vpop.f32.mrb[0].mxu0
      %530 = vmatprep.mubr.bf16.mxu0 0
      %531 = vmatmul.mubr.bf16.gmra.mrb[0].mxu0 %v482
      %v532 = vpop.f32.mrb[0].mxu0
      %v533 = vadd.f32 %v430, %v532
      %v534 = vpop.f32.mrb[0].mxu0
      %v535 = vpop.f32.mrb[0].mxu0
      %v536 = vadd.f32 %v435, %v535
      %v537 = vpop.f32.mrb[0].mxu0
      %538 = vmatprep.mubr.bf16.mxu0 0
      %539 = vmatmul.mubr.bf16.gmra.mrb[0].mxu0 %v485
      %v540 = vpop.f32.mrb[0].mxu0
      %v541 = vadd.f32 %v440, %v540
      %v542 = vpop.f32.mrb[0].mxu0
      %v543 = vpop.f32.mrb[0].mxu0
      %v544 = vadd.f32 %v445, %v543
      %v545 = vpop.f32.mrb[0].mxu0
      %546 = vmatprep.mubr.bf16.mxu0 0
      %547 = vmatmul.mubr.bf16.gmra.mrb[0].mxu0 %v488
      %v548 = vpop.f32.mrb[0].mxu0
      %v549 = vadd.f32 %v450, %v548
      %v550 = vpop.f32.mrb[0].mxu0
      %v551 = vpop.f32.mrb[0].mxu0
      %v552 = vadd.f32 %v455, %v551
      %v553 = vpop.f32.mrb[0].mxu0
      %554 = vdwg.mxu0
      %v555 = vmax.f32 %v525, 0.0
      %v556 = vmax.f32 %v528, 0.0
      %v557 = vmax.f32 %v533, 0.0
      %v558 = vmax.f32 %v536, 0.0
      %v559 = vmax.f32 %v541, 0.0
      %v560 = vmax.f32 %v544, 0.0
      %v561 = vmax.f32 %v549, 0.0
      %v562 = vmax.f32 %v552, 0.0
      %v563 = vld [vmem:[%s1 + $0x48] sm:$0xf]
      %v564 = vld [vmem:[%s1 + $0x4c] sm:$0xf]
      %v565 = vpack.c.bf16 %v556, %v555
      %v566 = vpack.c.bf16 %v558, %v557
      %v567 = vpack.c.bf16 %v560, %v559
      %v568 = vpack.c.bf16 %v562, %v561
      %v569 = vld [vmem:[%s2 + $0x90] sm:$0xff]
      %v570 = vld [vmem:[%s2 + $0x98] sm:$0xff]
      %572 = vset.pattern.permute.xlu0 0
      %573 = vperm.xlu0 %572, %v569
      %v574 = vpop.permute.xlu0 %573
      %577 = vset.pattern.permute.xlu0 0
      %578 = vperm.xlu0 %577, %v570
      %v579 = vpop.permute.xlu0 %578
      %v583 = vunpack.c.l.b16 %v563
      %v584 = vunpack.c.l.b16 %v564
      %v585 = vpack.c.b16 %v584, %v583
      %v587 = vsel %vm477, %v585, 0
      %589 = vmatprep.subr.bf16.mxu0 0
      %590 = vmatpush1.bf16.msra.mxu0 %v565
      %591 = vmatprep.subr.bf16.mxu0 0
      %592 = vmatpush1.bf16.msra.mxu0 %v566
      %593 = vmatprep.subr.bf16.mxu0 0
      %594 = vmatpush1.bf16.msra.mxu0 %v567
      %595 = vmatprep.subr.bf16.mxu0 0
      %596 = vmatpush1.bf16.msra.mxu0 %v568
      %597 = vmatprep.subr.bf16.mxu0 0
      %598 = vmatpush1.bf16.msra.mxu0 0
      %599 = vmatprep.subr.bf16.mxu0 0
      %600 = vmatpush1.bf16.msra.mxu0 0
      %601 = vmatprep.subr.bf16.mxu0 0
      %602 = vmatpush1.bf16.msra.mxu0 0
      %603 = vmatprep.subr.bf16.mxu0 0
      %604 = vmatpush1.bf16.msra.mxu0 0
      %605 = vmatprep.subr.bf16.mxu0 0
      %606 = vmatpush1.bf16.msra.mxu0 0
      %607 = vmatprep.subr.bf16.mxu0 0
      %608 = vmatpush1.bf16.msra.mxu0 0
      %609 = vmatprep.subr.bf16.mxu0 0
      %610 = vmatpush1.bf16.msra.mxu0 0
      %611 = vmatprep.subr.bf16.mxu0 0
      %612 = vmatpush1.bf16.msra.mxu0 0
      %613 = vmatprep.subr.bf16.mxu0 0
      %614 = vmatpush1.bf16.msra.mxu0 0
      %615 = vmatprep.subr.bf16.mxu0 0
      %616 = vmatpush1.bf16.msra.mxu0 0
      %617 = vmatprep.subr.bf16.mxu0 0
      %618 = vmatpush1.bf16.msra.mxu0 0
      %619 = vmatprep.subr.bf16.mxu0 0
      %620 = vmatpush1.bf16.msra.mxu0 0
      %621 = vmatprep.mubr.bf16.mxu0 0
      %622 = vmatmul.mubr.bf16.gmra.mrb[0].mxu0 %v587
      %v623 = vpop.f32.mrb[0].mxu0
      %v624 = vadd.f32 %v574, %v623
      %v625 = vpop.f32.mrb[0].mxu0
      %v626 = vpop.f32.mrb[0].mxu0
      %v627 = vadd.f32 %v579, %v626
      %v628 = vpop.f32.mrb[0].mxu0
      %629 = vdwg.mxu0
      %v630 = vmax.f32 %v624, 0.0
      %v631 = vmax.f32 %v627, 0.0
      %v632 = vld [vmem:[%s1 + $0x50] sm:$0xf]
      %v633 = vld [vmem:[%s1 + $0x54] sm:$0xf]
      %v634 = vunpack.c.l.bf16 %v632
      %v635 = vunpack.c.l.bf16 %v633
      %637 = vset.pattern.permute.xlu0 0
      %638 = vperm.xlu0 %637, %v634
      %v639 = vpop.permute.xlu0 %638
      %642 = vset.pattern.permute.xlu0 0
      %643 = vperm.xlu0 %642, %v635
      %v644 = vpop.permute.xlu0 %643
      %v646 = vmul.f32 %v639, %v630
      %v647 = vmul.f32 %v644, %v631
      %v648 = vadd.f32 %v646, %v647
      %v649 = vrot.slane %v648, 4
      %v650 = vadd.f32 %v648, %v649
      %v651 = vrot.slane %v650, 2
      %v652 = vadd.f32 %v650, %v651
      %v653 = vrot.slane %v652, 1
      %v654 = vadd.f32 %v652, %v653
      %v655 = vld [vmem:[%s2 + $0xa0] sm:$0x1]
      %657 = vset.pattern.permute.xlu0 0
      %658 = vperm.xlu0 %657, %v655
      %v659 = vpop.permute.xlu0 %658
      %v661 = vadd.f32 %v654, %v659
      %662 = vst [vmem:[%s163] sm:$0x1] %v661
      %p663 = scmp.lt.s32.totalorder %s14, 1
      %s664 = scalar_select %p663, %s14, 1
      %s665 = scalar_lea.vmem %s3, %s664
      // Predicated region
      $region33: #{_lambda_.1} parent=31 // pred_check
        %p666 = pneg %p100
      $region34: #{_lambda_.1} parent=31 // pred_check_branch
        %668 = sbr.rel (%p666) target = $region36
      $region35: #{_lambda_.1} parent=31 // pred_region
        _
      $region36: #{_lambda_.1} parent=31 // pred_fallthru
        _
    $region32: #{_lambda_.1} parent=5 // pred_fallthru
      _
    %p669 = scmp.le.s32.totalorder 2, %s9
    // Predicated region
    $region37: #{_lambda_.1} parent=5 // pred_check
      %p670 = pneg %p669
    $region38: #{_lambda_.1} parent=5 // pred_check_branch
      %672 = sbr.rel (%p670) target = $region40
    $region39: #{_lambda_.1} parent=5 // pred_region
      %s673 = ssub.s32 %s9, 2
      // Predicated region
      $region41: #{_lambda_.1} parent=39 // pred_check
        %p674 = pneg %p106
      $region42: #{_lambda_.1} parent=39 // pred_check_branch
        %676 = sbr.rel (%p674) target = $region44
      $region43: #{_lambda_.1} parent=39 // pred_region
        %p677 = scmp.lt.s32.totalorder %s15, 1
        %s678 = scalar_select %p677, %s15, 1
        %s679 = scalar_lea.vmem %s3, %s678
      $region44: #{_lambda_.1} parent=39 // pred_fallthru
        _
    $region40: #{_lambda_.1} parent=5 // pred_fallthru
      _
  $region6: #{_lambda_.1} parent=0 // loop_footer
    %s13 = sadd.s32 1, %s9
  $region7: #{_lambda_.1} parent=0 // loop_footer_branch
    %8 = sbr.rel target = $region3
  $region8: #{_lambda_.1} parent=0 // loop_exit
    _

</llo_original>
